<compile_context>
chip_gen: v6e
topology: v6e:2x2x1
jax: 0.10.0
libtpu: 0.0.40
codegen_flags: <defaults>
</compile_context>

<pallas_src>
import math

import jax
import jax.numpy as jnp
from jax.experimental import pallas as pl
from jax.experimental.pallas import tpu as pltpu

_LANE = 128
_TILE_BYTE_BUDGET = 1 << 20           # ~1 MiB per x/out tile (85%+ HBM roofline regime)
_MIN_VMEM_LIMIT = 8 * 1024 * 1024
_MAX_VMEM_LIMIT = 32 * 1024 * 1024    # stay well under v7x's 64 MiB physical VMEM


def _add_pe_kernel(x_ref, pe_ref, o_ref):
    # Elementwise hot path.  pe_ref is (1, tl, 128) and broadcasts over the
    # leading (batch-block) axis of x_ref.  astype matches torch promotion and
    # is a no-op when dtypes already agree.
    o_ref[...] = x_ref[...].astype(o_ref.dtype) + pe_ref[...]


def make_positional_encoding(in_channels: int, max_length: int,
                             dtype=jnp.float32) -> jnp.ndarray:
    """Deterministic buffer construction, mirrors the PyTorch __init__."""
    position = jnp.arange(max_length, dtype=jnp.float32)[:, None]             # (L, 1)
    div_term = jnp.exp(
        jnp.arange(0, in_channels, 2, dtype=jnp.float32)
        * (-math.log(10000.0) / in_channels)
    )[None, :]                                                                 # (1, ceil(C/2))
    angles = position * div_term                                               # (L, ceil(C/2))
    pe = jnp.zeros((1, max_length, in_channels), dtype=jnp.float32)
    pe = pe.at[0, :, 0::2].set(jnp.sin(angles))
    pe = pe.at[0, :, 1::2].set(jnp.cos(angles)[:, : in_channels // 2])
    return pe.astype(dtype)


def _sublane_multiple(dtype) -> int:
    # Packed-sublane granularity: 8 rows for 32-bit, 16 for 16-bit, 32 for 8-bit.
    itemsize = jnp.dtype(dtype).itemsize
    return 8 * max(1, 4 // max(1, itemsize))


def _pick_tiles(n_batch: int, rows: int, itemsize: int, sub: int):
    """Pick (batch_block, row_block) targeting ~_TILE_BYTE_BUDGET per x tile."""
    target_rows = max(sub, _TILE_BYTE_BUDGET // (_LANE * itemsize))
    if rows >= target_rows:
        tl = (target_rows // sub) * sub          # sublane-aligned, <= rows
        bn = 1
    else:
        # Small per-batch slab: full row extent (a legal block even if not a
        # multiple of 8) and several batch elements per step to amortize the
        # grid-step overhead and one pe load over bN batches.
        tl = rows
        per_batch = rows * _LANE * itemsize
        bn = max(1, min(n_batch, _TILE_BYTE_BUDGET // max(per_batch, 1)))
    return bn, tl


def positional_encoding_forward(x: jnp.ndarray, pe: jnp.ndarray,
                                *, donate_x: bool = False) -> jnp.ndarray:
    """x: (N, L, C), pe: (1, max_length >= L, C) -> (N, L, C)."""
    N, L, C = x.shape
    assert pe.ndim == 3 and pe.shape[0] == 1 and pe.shape[2] == C
    assert pe.shape[1] >= L, "sequence length exceeds max_length of pe"

    # torch promotion semantics: result dtype = promote(x.dtype, pe.dtype).
    out_dtype = jnp.result_type(x.dtype, pe.dtype)
    pe = pe[:, :L, :].astype(out_dtype)

    flat = L * C
    pad = (-flat) % _LANE
    rows = (flat + pad) // _LANE

    x2 = x.reshape(N, flat)
    pe2 = pe.reshape(1, flat)
    if pad:
        # Lane-dense padding in the wrapper: every store in the kernel stays a
        # full-lane unmasked vst; padded tail is sliced off after the call.
        x2 = jnp.pad(x2, ((0, 0), (0, pad)))
        pe2 = jnp.pad(pe2, ((0, 0), (0, pad)))
    x_in = x2.reshape(N, rows, _LANE)
    pe_in = pe2.reshape(1, rows, _LANE)

    itemsize = jnp.dtype(out_dtype).itemsize
    sub = _sublane_multiple(out_dtype)
    bn, tl = _pick_tiles(N, rows, itemsize, sub)

    # Row tiles lead (bigger axis -> balanced v7x megacore sharding); batch is
    # innermost so pe's block index is unchanged between consecutive grid steps
    # and its DMA is elided (pe read once per row tile, not once per (batch, tile)).
    grid = (pl.cdiv(rows, tl), pl.cdiv(N, bn))

    in_specs = [
        pl.BlockSpec((bn, tl, _LANE), lambda s, n: (n, s, 0)),   # x
        pl.BlockSpec((1, tl, _LANE), lambda s, n: (0, s, 0)),    # pe (batch-invariant)
    ]
    out_specs = pl.BlockSpec((bn, tl, _LANE), lambda s, n: (n, s, 0))
    out_shape = jax.ShapeDtypeStruct((N, rows, _LANE), out_dtype)

    x_tile_bytes = bn * tl * _LANE * itemsize
    pe_tile_bytes = tl * _LANE * itemsize
    vmem_limit = int(min(_MAX_VMEM_LIMIT,
                         max(_MIN_VMEM_LIMIT,
                             2 * (2 * x_tile_bytes + pe_tile_bytes) + (2 << 20))))

    cost = pl.CostEstimate(
        flops=N * rows * _LANE,
        transcendentals=0,
        # read x once + write out once + read pe once (batch-innermost reuse).
        bytes_accessed=(2 * N + 1) * rows * _LANE * itemsize,
    )

    aliases = {}
    if donate_x and pad == 0 and x.dtype == out_dtype:
        aliases = {0: 0}

    out = pl.pallas_call(
        _add_pe_kernel,
        out_shape=out_shape,
        grid_spec=pltpu.PrefetchScalarGridSpec(
            num_scalar_prefetch=0,
            grid=grid,
            in_specs=in_specs,
            out_specs=out_specs,
        ),
        compiler_params=pltpu.CompilerParams(
            dimension_semantics=("parallel", "parallel"),
            vmem_limit_bytes=vmem_limit,
        ),
        cost_estimate=cost,
        input_output_aliases=aliases,
    )(x_in, pe_in)

    out = out.reshape(N, rows * _LANE)
    if pad:
        out = out[:, :flat]
    return out.reshape(N, L, C)


if __name__ == "__main__":
    # Shapes consistent with the module: batch=2, seq=8, in_channels=32,
    # max_length=16 (so the wrapper exercises the pe[:, :L] slice).
    N, L, C = 2, 8, 32
    key = jax.random.PRNGKey(0)
    x = jax.random.normal(key, (N, L, C), dtype=jnp.float32)
    pe = make_positional_encoding(in_channels=C, max_length=16)

    out = positional_encoding_forward(x, pe)
    out = jax.block_until_ready(out)

    ref = x + pe[:, :L, :]
    assert out.shape == (N, L, C)
    assert jnp.allclose(out, ref, atol=1e-6), "mismatch vs reference"

    # Also exercise the lane-padded path (L*C not a multiple of 128).
    N2, L2, C2 = 2, 5, 24
    x2 = jax.random.normal(jax.random.PRNGKey(1), (N2, L2, C2), dtype=jnp.float32)
    pe2 = make_positional_encoding(in_channels=C2, max_length=8)
    out2 = jax.block_until_ready(positional_encoding_forward(x2, pe2))
    assert jnp.allclose(out2, x2 + pe2[:, :L2, :], atol=1e-6), "padded-path mismatch"

    print("KERNEL_OK")
</pallas_src>

<mosaic_0001>
module attributes {stable_mosaic.version = 11 : i64} {
  func.func @_add_pe_kernel(%arg0: i32, %arg1: i32, %arg2: memref<2x2x128xf32, #tpu.memory_space<vmem>>, %arg3: memref<1x2x128xf32, #tpu.memory_space<vmem>>, %arg4: memref<2x2x128xf32, #tpu.memory_space<vmem>>) attributes {dimension_semantics = [#tpu.dimension_semantics<parallel>, #tpu.dimension_semantics<parallel>], iteration_bounds = array<i64: 1, 1>, scalar_prefetch = 0 : i64, scratch_operands = 0 : i64, tpu.core_type = #tpu.core_type<tc>, window_params = [{transform_indices = @transform_0, window_bounds = array<i64: 2, 2, 128>}, {transform_indices = @transform_1, window_bounds = array<i64: 1, 2, 128>}, {transform_indices = @transform_2, window_bounds = array<i64: 2, 2, 128>}]} {
    %c0 = arith.constant 0 : index
    %c0_0 = arith.constant 0 : index
    %c0_1 = arith.constant 0 : index
    %0 = vector.load %arg2[%c0, %c0_0, %c0_1] : memref<2x2x128xf32, #tpu.memory_space<vmem>>, vector<2x2x128xf32>
    %c0_2 = arith.constant 0 : index
    %c0_3 = arith.constant 0 : index
    %c0_4 = arith.constant 0 : index
    %1 = vector.load %arg3[%c0_2, %c0_3, %c0_4] : memref<1x2x128xf32, #tpu.memory_space<vmem>>, vector<1x2x128xf32>
    %2 = vector.broadcast %1 : vector<1x2x128xf32> to vector<2x2x128xf32>
    %3 = arith.addf %0, %2 : vector<2x2x128xf32>
    %c0_5 = arith.constant 0 : index
    %c0_6 = arith.constant 0 : index
    %c0_7 = arith.constant 0 : index
    %4 = vector.load %arg4[%c0_5, %c0_6, %c0_7] : memref<2x2x128xf32, #tpu.memory_space<vmem>>, vector<2x2x128xf32>
    tpu.vector_store %arg4[%c0_5, %c0_6, %c0_7], %3 {strides = array<i32>} : memref<2x2x128xf32, #tpu.memory_space<vmem>>, vector<2x2x128xf32>,
    return
  }
  func.func @transform_0(%arg0: i32, %arg1: i32) -> (i32, i32, i32) {
    %c0_i32 = arith.constant 0 : i32
    %c0_i32_0 = arith.constant 0 : i32
    return %arg1, %arg0, %c0_i32 : i32, i32, i32
  }
  func.func @transform_1(%arg0: i32, %arg1: i32) -> (i32, i32, i32) {
    %c0_i32 = arith.constant 0 : i32
    %c0_i32_0 = arith.constant 0 : i32
    %c0_i32_1 = arith.constant 0 : i32
    return %c0_i32, %arg0, %c0_i32_0 : i32, i32, i32
  }
  func.func @transform_2(%arg0: i32, %arg1: i32) -> (i32, i32, i32) {
    %c0_i32 = arith.constant 0 : i32
    %c0_i32_0 = arith.constant 0 : i32
    return %arg1, %arg0, %c0_i32 : i32, i32, i32
  }
}

</mosaic_0001>

<llo_original>
// kernel: tpu_custom_call.1
$region0: #{tpu_custom_call.1}
  #allocation0 [shape = 'u32[]', space=smem, size = 0x4, offset = 0x4, fixed_abs, tag = 'smem constant byte address 0x4 - core index']
  #allocation1 [shape = 'u32[144,128]{1,0:T(1,128)}', space=vmem, size = 0x12000, scoped, tag = 'internal scratch']
  %s0 = inlined_call_operand.hbm [shape: f32[2,2,128], index: 0, kind: input, shape index: {}]
  %s1 = inlined_call_operand.hbm [shape: f32[1,2,128], index: 1, kind: input, shape index: {}]
  %s2 = inlined_call_operand.hbm [shape: f32[2,2,128], index: 2, kind: output, shape index: {}]
  %s3 = sld [smem:[#allocation0]]
  $region26: #{tpu_custom_call.1} parent=0
    _
  %s5 = ssub.s32 1, %s3
  %s6 = scalar_select 0, %s5, %s3
  $region1: #{tpu_custom_call.1} parent=0
    #allocation2 [shape = 'u8[2048]{0}', space=vmem, size = 0x800, scoped, tag = 'input window, operand 0, single buffered']
    #allocation3 [shape = 's32[1]{0}', space=sflag, size = 0x4, scoped, tag = 'scoped memory for tpu_custom_call.1']
    #allocation4 [shape = 's32[1]{0}', space=sflag, size = 0x4, scoped, tag = 'scoped memory for tpu_custom_call.1']
    #allocation5 [shape = 'u8[1024]{0}', space=vmem, size = 0x400, scoped, tag = 'input window, operand 1, single buffered']
    #allocation6 [shape = 's32[1]{0}', space=sflag, size = 0x4, scoped, tag = 'scoped memory for tpu_custom_call.1']
    #allocation7 [shape = 'u8[2048]{0}', space=vmem, size = 0x800, scoped, tag = 'output window, operand 0, single buffered']
    %7 = vsyncpa [#allocation3], 0
    %8 = vsyncpa [#allocation6], 0
    %9 = vsyncpa [#allocation4], 0
    // Predicated region
    $region2: #{tpu_custom_call.1} parent=1 // pred_check
      _
    $region3: #{tpu_custom_call.1} parent=1 // pred_check_branch
      %11 = sbr.rel (0) target = $region5
    $region4: #{tpu_custom_call.1} parent=1 // pred_region
      %s13 = ssub.s32 64, 64
      %14 = vsyncadd [#allocation3], %s13
      %s15 = sshll.u32 [#allocation2], 4
      %s16 = int_to_ptr.vmem [resolvable:$true] %s15
      %21 = dma.hbm_to_vmem [thread:$0]  %s0, 64, %s16, [#allocation3], 32, 32, 2
    $region5: #{tpu_custom_call.1} parent=1 // pred_fallthru
      _
    // Predicated region
    $region6: #{tpu_custom_call.1} parent=1 // pred_check
      _
    $region7: #{tpu_custom_call.1} parent=1 // pred_check_branch
      %23 = sbr.rel (0) target = $region9
    $region8: #{tpu_custom_call.1} parent=1 // pred_region
      %s25 = ssub.s32 32, 32
      %26 = vsyncadd [#allocation6], %s25
      %s28 = sshll.u32 [#allocation5], 4
      %s29 = int_to_ptr.vmem [resolvable:$true] %s28
      %31 = dma.hbm_to_vmem [thread:$0]  %s1, 32, %s29, [#allocation6]
    $region9: #{tpu_custom_call.1} parent=1 // pred_fallthru
      _
    // Predicated region
    $region10: #{tpu_custom_call.1} parent=1 // pred_check
      _
    $region11: #{tpu_custom_call.1} parent=1 // pred_check_branch
      %33 = sbr.rel (0) target = $region13
    $region12: #{tpu_custom_call.1} parent=1 // pred_region
      %34 = dma.done [#allocation3], 64
    $region13: #{tpu_custom_call.1} parent=1 // pred_fallthru
      _
    // Predicated region
    $region14: #{tpu_custom_call.1} parent=1 // pred_check
      _
    $region15: #{tpu_custom_call.1} parent=1 // pred_check_branch
      %36 = sbr.rel (0) target = $region17
    $region16: #{tpu_custom_call.1} parent=1 // pred_region
      %37 = dma.done [#allocation6], 32
    $region17: #{tpu_custom_call.1} parent=1 // pred_fallthru
      _
    %v38 = vld [vmem:[#allocation2] sm:$0x3]
    %v39 = vld [vmem:[#allocation2 + $0x2] sm:$0x3]
    %v40 = vld [vmem:[#allocation5] sm:$0x3]
    %v41 = vadd.f32 %v38, %v40
    %v42 = vadd.f32 %v39, %v40
    %43 = vst [vmem:[#allocation7] sm:$0x3] %v41
    %44 = vst [vmem:[#allocation7 + $0x2] sm:$0x3] %v42
    // Predicated region
    $region18: #{tpu_custom_call.1} parent=1 // pred_check
      _
    $region19: #{tpu_custom_call.1} parent=1 // pred_check_branch
      %46 = sbr.rel (0) target = $region21
    $region20: #{tpu_custom_call.1} parent=1 // pred_region
      %s48 = ssub.s32 64, 64
      %49 = vsyncadd [#allocation4], %s48
      %s50 = sshll.u32 [#allocation7], 4
      %s51 = int_to_ptr.vmem [resolvable:$true] %s50
      %56 = dma.vmem_to_hbm [thread:$0]  %s51, 64, %s2, [#allocation4], 32, 32, 2
    $region21: #{tpu_custom_call.1} parent=1 // pred_fallthru
      _
    // Predicated region
    $region22: #{tpu_custom_call.1} parent=1 // pred_check
      _
    $region23: #{tpu_custom_call.1} parent=1 // pred_check_branch
      %58 = sbr.rel (0) target = $region25
    $region24: #{tpu_custom_call.1} parent=1 // pred_region
      %59 = dma.done [#allocation4], 64
    $region25: #{tpu_custom_call.1} parent=1 // pred_fallthru
      _
    %60 = vsyncpa [#allocation3], 1
    %61 = vsyncpa [#allocation6], 1
    %62 = vsyncpa [#allocation4], 1

</llo_original>
